<compile_context>
chip_gen: v7x
topology: tpu7x:2x2x1
jax: 0.10.0
libtpu: 0.0.40
codegen_flags: <defaults>
</compile_context>

<pallas_src>
import functools

import jax
import jax.numpy as jnp
from jax.experimental import pallas as pl
from jax.experimental.pallas import tpu as pltpu

_BIG = 1e30  # finite sentinel neutralizing padded rows in phase 2 (relu -> 0)


def _round_up(a, b):
    return ((a + b - 1) // b) * b


# ---------------------------------------------------------------------------
# Phase 1: per-row statistics over a (TILE_N, C_pad) tile.
#   s_y[i]    = x[i, y[i]]                              (torch.gather)
#   s_topk[i] = k-th largest of x[i] with x[i, y[i]] set to 0
#               (duplicate-counting, matching torch.sort descending)
# ---------------------------------------------------------------------------
def _phase1_kernel(x_ref, y_ref, sy_ref, stopk_ref, *, k):
    x = x_ref[...].astype(jnp.float32)                   # (T, C) upcast in-kernel
    y = y_ref[...]                                       # (T, 1) int32
    T, C = x.shape

    col = jax.lax.broadcasted_iota(jnp.int32, (T, C), 1)
    is_y = col == y                                      # one-hot of label column

    # s_y via the otherwise-idle MXU: row-sum of the one-hot-masked x.
    ones_c = jnp.ones((C, 1), jnp.float32)
    s_y = jnp.dot(jnp.where(is_y, x, 0.0), ones_c,
                  preferred_element_type=jnp.float32)    # (T, 1)

    # x.scatter(-1, y, 0.0)
    cur = jnp.where(is_y, 0.0, x)

    # k-th largest per row == sorted_descending[:, k-1]. Remove exactly one
    # current maximum per iteration (ties broken by smallest column index so
    # duplicates are counted like a sort), k-1 times, then take the max.
    neg_inf = jnp.float32(-jnp.inf)
    for _ in range(k - 1):
        m = jnp.max(cur, axis=-1, keepdims=True)                         # (T, 1)
        idx = jnp.min(jnp.where(cur == m, col, C), axis=-1, keepdims=True)
        cur = jnp.where(col == idx, neg_inf, cur)
    s_topk = jnp.max(cur, axis=-1, keepdims=True)                        # (T, 1)

    sy_ref[...] = s_y
    stopk_ref[...] = s_topk


# ---------------------------------------------------------------------------
# Phase 2: mean_{i,j} relu(1 + s_topk[j] - s_y[i]) without materializing (N,N).
# Grid tiles the pairwise matrix; the (1,1) output block accumulates across
# the whole grid and is scaled by 1/N^2 on the last step.
# ---------------------------------------------------------------------------
def _phase2_kernel(sy_ref, st_ref, out_ref, *, inv_count):
    i = pl.program_id(0)
    j = pl.program_id(1)

    @pl.when(jnp.logical_and(i == 0, j == 0))
    def _():
        out_ref[...] = jnp.zeros_like(out_ref)

    a = sy_ref[...]                                      # (T2, 1)
    b = st_ref[...]                                      # (1, T2)
    m = jnp.maximum(1.0 + b - a, 0.0)                    # (T2, T2) VPU broadcast
    ones_j = jnp.ones((m.shape[1], 1), jnp.float32)
    col_sum = jnp.dot(m, ones_j,
                      preferred_element_type=jnp.float32)  # (T2, 1) lane-sum on MXU
    out_ref[...] += jnp.sum(col_sum, axis=0, keepdims=True)  # (1, 1)

    @pl.when(jnp.logical_and(i == pl.num_programs(0) - 1,
                             j == pl.num_programs(1) - 1))
    def _():
        out_ref[...] = out_ref[...] * inv_count


def loss1(x, y, k):
    """Pallas TPU implementation of Loss1(k).forward(x, y)."""
    N, C = x.shape

    # --- class axis lane-dense: pad C to a multiple of 128 with -inf
    # (never selected by top-k; one-hot mask keeps it out of s_y).
    C_pad = max(_round_up(C, 128), 128)
    x_p = x
    if C_pad != C:
        x_p = jnp.pad(x_p, ((0, 0), (0, C_pad - C)),
                      constant_values=-jnp.inf)

    # --- row tile sized for VMEM (double-buffered x tile <= ~2 MiB).
    tile_n = min(256, max(8, ((2 * 1024 * 1024) // (4 * C_pad)) // 8 * 8))
    tile_n = min(tile_n, _round_up(N, 8))
    N_pad = _round_up(N, tile_n)
    if N_pad != N:
        x_p = jnp.pad(x_p, ((0, N_pad - N), (0, 0)), constant_values=0.0)

    y_p = y.reshape(-1, 1).astype(jnp.int32)
    if N_pad != N:
        y_p = jnp.pad(y_p, ((0, N_pad - N), (0, 0)), constant_values=0)

    s_y_col, s_topk_col = pl.pallas_call(
        functools.partial(_phase1_kernel, k=k),
        grid=(N_pad // tile_n,),
        in_specs=[
            pl.BlockSpec((tile_n, C_pad), lambda i: (i, 0)),
            pl.BlockSpec((tile_n, 1), lambda i: (i, 0)),
        ],
        out_specs=[
            pl.BlockSpec((tile_n, 1), lambda i: (i, 0)),
            pl.BlockSpec((tile_n, 1), lambda i: (i, 0)),
        ],
        out_shape=[
            jax.ShapeDtypeStruct((N_pad, 1), jnp.float32),
            jax.ShapeDtypeStruct((N_pad, 1), jnp.float32),
        ],
        compiler_params=pltpu.CompilerParams(
            dimension_semantics=("parallel",)),
    )(x_p, y_p)

    # --- phase 2 tiling of the pairwise matrix.
    t2 = min(256, N_pad)
    N2 = _round_up(N_pad, t2)
    if N2 != N_pad:
        s_y_col = jnp.pad(s_y_col, ((0, N2 - N_pad), (0, 0)))
        s_topk_col = jnp.pad(s_topk_col, ((0, N2 - N_pad), (0, 0)))
    if N2 != N:
        valid = (jnp.arange(N2) < N)[:, None]
        s_y_col = jnp.where(valid, s_y_col, _BIG)        # padded i rows -> 0
        s_topk_col = jnp.where(valid, s_topk_col, -_BIG)  # padded j cols -> 0
    # layout plumbing in the wrapper (cheap): lane-dense row for s_topk.
    s_topk_row = s_topk_col.reshape(1, N2)

    out = pl.pallas_call(
        functools.partial(_phase2_kernel, inv_count=1.0 / float(N * N)),
        grid=(N2 // t2, N2 // t2),
        in_specs=[
            pl.BlockSpec((t2, 1), lambda i, j: (i, 0)),
            pl.BlockSpec((1, t2), lambda i, j: (0, j)),
        ],
        out_specs=pl.BlockSpec((1, 1), lambda i, j: (0, 0)),
        out_shape=jax.ShapeDtypeStruct((1, 1), jnp.float32),
        compiler_params=pltpu.CompilerParams(
            dimension_semantics=("arbitrary", "arbitrary")),
    )(s_y_col, s_topk_row)
    return out[0, 0]


def loss1_ref(x, y, k):
    """Pure-JAX reference mirroring the PyTorch forward exactly."""
    N, C = x.shape
    oh = jax.nn.one_hot(y, C, dtype=bool)
    x_no_y = jnp.where(oh, 0.0, x)
    s_topk = -jnp.sort(-x_no_y, axis=-1)[:, k - 1]                    # (N,)
    s_y = jnp.take_along_axis(x, y[:, None], axis=-1)                 # (N, 1)
    return jnp.mean(jnp.maximum(1.0 + s_topk - s_y, 0.0))             # (N, N) -> mean


if __name__ == "__main__":
    key = jax.random.PRNGKey(0)
    kx, ky = jax.random.split(key)
    N, C, k = 8, 16, 3                   # small shapes: batch=8, classes=16
    x = jax.random.normal(kx, (N, C), dtype=jnp.float32)
    y = jax.random.randint(ky, (N,), 0, C, dtype=jnp.int32)

    out = jax.block_until_ready(loss1(x, y, k))
    ref = loss1_ref(x, y, k)
    assert jnp.allclose(out, ref, atol=1e-5, rtol=1e-5), (out, ref)
    print("KERNEL_OK")
</pallas_src>

<mosaic_0001>
module attributes {stable_mosaic.version = 11 : i64} {
  func.func @_phase1_kernel(%arg0: i32, %arg1: memref<8x128xf32, #tpu.memory_space<vmem>>, %arg2: memref<8x1xi32, #tpu.memory_space<vmem>>, %arg3: memref<8x1xf32, #tpu.memory_space<vmem>>, %arg4: memref<8x1xf32, #tpu.memory_space<vmem>>) attributes {dimension_semantics = [#tpu.dimension_semantics<parallel>], iteration_bounds = array<i64: 1>, scalar_prefetch = 0 : i64, scratch_operands = 0 : i64, tpu.core_type = #tpu.core_type<tc>, window_params = [{transform_indices = @transform_0, window_bounds = array<i64: 8, 128>}, {transform_indices = @transform_1, window_bounds = array<i64: 8, 1>}, {transform_indices = @transform_2, window_bounds = array<i64: 8, 1>}, {transform_indices = @transform_3, window_bounds = array<i64: 8, 1>}]} {
    %c0 = arith.constant 0 : index
    %c0_0 = arith.constant 0 : index
    %0 = vector.load %arg1[%c0, %c0_0] : memref<8x128xf32, #tpu.memory_space<vmem>>, vector<8x128xf32>
    %c0_1 = arith.constant 0 : index
    %c0_2 = arith.constant 0 : index
    %1 = vector.load %arg2[%c0_1, %c0_2] : memref<8x1xi32, #tpu.memory_space<vmem>>, vector<8x1xi32>
    %2 = tpu.iota {dimensions = array<i32: 1>} : vector<8x128xi32>
    %3 = vector.broadcast %1 : vector<8x1xi32> to vector<8x128xi32>
    %4 = arith.cmpi eq, %2, %3 : vector<8x128xi32>
    %cst = arith.constant 1.000000e+00 : f32
    %5 = vector.broadcast %cst : f32 to vector<128x1xf32>
    %cst_3 = arith.constant 0.000000e+00 : f32
    %6 = vector.broadcast %cst_3 : f32 to vector<8x128xf32>
    %7 = arith.select %4, %0, %6 : vector<8x128xi1>, vector<8x128xf32>
    %cst_4 = arith.constant dense<0.000000e+00> : vector<8x1xf32>
    %8 = tpu.matmul %7, %5, %cst_4 {dimension_numbers = #tpu.dot_dimension_numbers<[1], [0], [0], [1], [0, 0, 1, 1], [], []>} : vector<8x128xf32>, vector<128x1xf32>, vector<8x1xf32> -> vector<8x1xf32>
    %cst_5 = arith.constant 0.000000e+00 : f32
    %9 = vector.broadcast %cst_5 : f32 to vector<8x128xf32>
    %10 = arith.select %4, %9, %0 : vector<8x128xi1>, vector<8x128xf32>
    %cst_6 = arith.constant dense<0xFF800000> : vector<8xf32>
    %11 = vector.multi_reduction <maximumf>, %10, %cst_6 [1] : vector<8x128xf32> to vector<8xf32>
    %12 = vector.shape_cast %11 : vector<8xf32> to vector<8x1xf32>
    %13 = vector.broadcast %12 : vector<8x1xf32> to vector<8x128xf32>
    %14 = arith.cmpf oeq, %10, %13 : vector<8x128xf32>
    %c128_i32 = arith.constant 128 : i32
    %15 = vector.broadcast %c128_i32 : i32 to vector<8x128xi32>
    %16 = arith.select %14, %2, %15 : vector<8x128xi1>, vector<8x128xi32>
    %cst_7 = arith.constant dense<2147483647> : vector<8xi32>
    %17 = vector.multi_reduction <minsi>, %16, %cst_7 [1] : vector<8x128xi32> to vector<8xi32>
    %18 = vector.shape_cast %17 : vector<8xi32> to vector<8x1xi32>
    %19 = vector.broadcast %18 : vector<8x1xi32> to vector<8x128xi32>
    %20 = arith.cmpi eq, %2, %19 : vector<8x128xi32>
    %cst_8 = arith.constant 0xFF800000 : f32
    %21 = vector.broadcast %cst_8 : f32 to vector<8x128xf32>
    %22 = arith.select %20, %21, %10 : vector<8x128xi1>, vector<8x128xf32>
    %cst_9 = arith.constant dense<0xFF800000> : vector<8xf32>
    %23 = vector.multi_reduction <maximumf>, %22, %cst_9 [1] : vector<8x128xf32> to vector<8xf32>
    %24 = vector.shape_cast %23 : vector<8xf32> to vector<8x1xf32>
    %25 = vector.broadcast %24 : vector<8x1xf32> to vector<8x128xf32>
    %26 = arith.cmpf oeq, %22, %25 : vector<8x128xf32>
    %c128_i32_10 = arith.constant 128 : i32
    %27 = vector.broadcast %c128_i32_10 : i32 to vector<8x128xi32>
    %28 = arith.select %26, %2, %27 : vector<8x128xi1>, vector<8x128xi32>
    %cst_11 = arith.constant dense<2147483647> : vector<8xi32>
    %29 = vector.multi_reduction <minsi>, %28, %cst_11 [1] : vector<8x128xi32> to vector<8xi32>
    %30 = vector.shape_cast %29 : vector<8xi32> to vector<8x1xi32>
    %31 = vector.broadcast %30 : vector<8x1xi32> to vector<8x128xi32>
    %32 = arith.cmpi eq, %2, %31 : vector<8x128xi32>
    %cst_12 = arith.constant 0xFF800000 : f32
    %33 = vector.broadcast %cst_12 : f32 to vector<8x128xf32>
    %34 = arith.select %32, %33, %22 : vector<8x128xi1>, vector<8x128xf32>
    %cst_13 = arith.constant dense<0xFF800000> : vector<8xf32>
    %35 = vector.multi_reduction <maximumf>, %34, %cst_13 [1] : vector<8x128xf32> to vector<8xf32>
    %36 = vector.shape_cast %35 : vector<8xf32> to vector<8x1xf32>
    %c0_14 = arith.constant 0 : index
    %c0_15 = arith.constant 0 : index
    %37 = vector.load %arg3[%c0_14, %c0_15] : memref<8x1xf32, #tpu.memory_space<vmem>>, vector<8x1xf32>
    tpu.vector_store %arg3[%c0_14, %c0_15], %8 {strides = array<i32>} : memref<8x1xf32, #tpu.memory_space<vmem>>, vector<8x1xf32>,
    %c0_16 = arith.constant 0 : index
    %c0_17 = arith.constant 0 : index
    %38 = vector.load %arg4[%c0_16, %c0_17] : memref<8x1xf32, #tpu.memory_space<vmem>>, vector<8x1xf32>
    tpu.vector_store %arg4[%c0_16, %c0_17], %36 {strides = array<i32>} : memref<8x1xf32, #tpu.memory_space<vmem>>, vector<8x1xf32>,
    return
  }
  func.func @transform_0(%arg0: i32) -> (i32, i32) {
    %c0_i32 = arith.constant 0 : i32
    %c0_i32_0 = arith.constant 0 : i32
    return %arg0, %c0_i32 : i32, i32
  }
  func.func @transform_1(%arg0: i32) -> (i32, i32) {
    %c0_i32 = arith.constant 0 : i32
    %c0_i32_0 = arith.constant 0 : i32
    return %arg0, %c0_i32 : i32, i32
  }
  func.func @transform_2(%arg0: i32) -> (i32, i32) {
    %c0_i32 = arith.constant 0 : i32
    %c0_i32_0 = arith.constant 0 : i32
    return %arg0, %c0_i32 : i32, i32
  }
  func.func @transform_3(%arg0: i32) -> (i32, i32) {
    %c0_i32 = arith.constant 0 : i32
    %c0_i32_0 = arith.constant 0 : i32
    return %arg0, %c0_i32 : i32, i32
  }
}

</mosaic_0001>

<llo_original>
// kernel: tpu_custom_call.1
$region0: #{tpu_custom_call.1}
  #allocation0 [shape = 'u32[]', space=smem, size = 0x4, offset = 0x4, fixed_abs, tag = 'smem constant byte address 0x4 - core index']
  #allocation1 [shape = 'u32[144,128]{1,0:T(1,128)}', space=vmem, size = 0x12000, scoped, tag = 'internal scratch']
  %s0 = inlined_call_operand.vmem [shape: f32[8,128], index: 0, kind: input, shape index: {}]
  %s1 = inlined_call_operand.vmem [shape: s32[8,1], index: 1, kind: input, shape index: {}]
  %s2 = inlined_call_operand.vmem [shape: f32[8,1], index: 2, kind: output, shape index: {0}]
  %s3 = inlined_call_operand.vmem [shape: f32[8,1], index: 3, kind: output, shape index: {1}]
  %4 = xla_tuple %s2, %s3
  %s5 = sld [smem:[#allocation0]]
  $region26: #{tpu_custom_call.1} parent=0
    _
  %s7 = ssub.s32 1, %s5
  %s8 = scalar_select 0, %s7, %s5
  // Predicated region
  $region2: #{tpu_custom_call.1} parent=0 // pred_check
    _
  $region3: #{tpu_custom_call.1} parent=0 // pred_check_branch
    %10 = sbr.rel (0) target = $region5
  $region4: #{tpu_custom_call.1} parent=0 // pred_region
    _
  $region5: #{tpu_custom_call.1} parent=0 // pred_fallthru
    _
  // Predicated region
  $region6: #{tpu_custom_call.1} parent=0 // pred_check
    _
  $region7: #{tpu_custom_call.1} parent=0 // pred_check_branch
    %12 = sbr.rel (0) target = $region9
  $region8: #{tpu_custom_call.1} parent=0 // pred_region
    _
  $region9: #{tpu_custom_call.1} parent=0 // pred_fallthru
    _
  %v13 = vld [vmem:[%s0] sm:$0xff]
  %v14 = vld [vmem:[%s1] sm:$0xff]
  %v15 = vlaneseq
  %v16 = vand.u32 %v15, 127
  %17 = vset.pattern.permute.xlu0 0
  %18 = vperm.xlu0 %17, %v14
  %v19 = vpop.permute.xlu0 %18
  %vm20 = vcmp.eq.s32.totalorder %v16, %v19
  %v21 = vsel %vm20, %v13, 0.0
  %22 = vmatprep.subr.mxu0 0.0
  %23 = vmatpush1.msra.mxu0 1.0
  %24 = vmatprep.subr.mxu0 0.0
  %25 = vmatpush1.msra.mxu0 1.0
  %26 = vmatprep.subr.mxu0 0.0
  %27 = vmatpush1.msra.mxu0 1.0
  %28 = vmatprep.subr.mxu0 0.0
  %29 = vmatpush1.msra.mxu0 1.0
  %30 = vmatprep.subr.mxu0 0.0
  %31 = vmatpush1.msra.mxu0 1.0
  %32 = vmatprep.subr.mxu0 0.0
  %33 = vmatpush1.msra.mxu0 1.0
  %34 = vmatprep.subr.mxu0 0.0
  %35 = vmatpush1.msra.mxu0 1.0
  %36 = vmatprep.subr.mxu0 0.0
  %37 = vmatpush1.msra.mxu0 1.0
  %38 = vmatprep.subr.mxu0 0.0
  %39 = vmatpush1.msra.mxu0 1.0
  %40 = vmatprep.subr.mxu0 0.0
  %41 = vmatpush1.msra.mxu0 1.0
  %42 = vmatprep.subr.mxu0 0.0
  %43 = vmatpush1.msra.mxu0 1.0
  %44 = vmatprep.subr.mxu0 0.0
  %45 = vmatpush1.msra.mxu0 1.0
  %46 = vmatprep.subr.mxu0 0.0
  %47 = vmatpush1.msra.mxu0 1.0
  %48 = vmatprep.subr.mxu0 0.0
  %49 = vmatpush1.msra.mxu0 1.0
  %50 = vmatprep.subr.mxu0 0.0
  %51 = vmatpush1.msra.mxu0 1.0
  %52 = vmatprep.subr.mxu0 0.0
  %53 = vmatpush1.msra.mxu0 1.0
  %54 = vmatprep.subr.mxu0 0.0
  %55 = vmatpush1.msra.mxu0 0.0
  %56 = vmatprep.subr.mxu0 0.0
  %57 = vmatpush1.msra.mxu0 0.0
  %58 = vmatprep.subr.mxu0 0.0
  %59 = vmatpush1.msra.mxu0 0.0
  %60 = vmatprep.subr.mxu0 0.0
  %61 = vmatpush1.msra.mxu0 0.0
  %62 = vmatprep.subr.mxu0 0.0
  %63 = vmatpush1.msra.mxu0 0.0
  %64 = vmatprep.subr.mxu0 0.0
  %65 = vmatpush1.msra.mxu0 0.0
  %66 = vmatprep.subr.mxu0 0.0
  %67 = vmatpush1.msra.mxu0 0.0
  %68 = vmatprep.subr.mxu0 0.0
  %69 = vmatpush1.msra.mxu0 0.0
  %70 = vmatprep.subr.mxu0 0.0
  %71 = vmatpush1.msra.mxu0 0.0
  %72 = vmatprep.subr.mxu0 0.0
  %73 = vmatpush1.msra.mxu0 0.0
  %74 = vmatprep.subr.mxu0 0.0
  %75 = vmatpush1.msra.mxu0 0.0
  %76 = vmatprep.subr.mxu0 0.0
  %77 = vmatpush1.msra.mxu0 0.0
  %78 = vmatprep.subr.mxu0 0.0
  %79 = vmatpush1.msra.mxu0 0.0
  %80 = vmatprep.subr.mxu0 0.0
  %81 = vmatpush1.msra.mxu0 0.0
  %82 = vmatprep.subr.mxu0 0.0
  %83 = vmatpush1.msra.mxu0 0.0
  %84 = vmatprep.subr.mxu0 0.0
  %85 = vmatpush1.msra.mxu0 0.0
  %86 = vmatprep.mubr.f32.mxu0 0.0
  %87 = vmatmul.mubr.f32.gmra.mrb[0].mxu0 %v21
  %v88 = vpop.f32.mrb[0].mxu0
  %v89 = vadd.f32 0.0, %v88
  %v90 = vpop.f32.mrb[0].mxu0
  %91 = vdwg.mxu0
  %v92 = vsel %vm20, 0.0, %v13
  %93 = vmax.xlane.f32.xlu0 %v92
  %v94 = vpop.xlane.xlu0 %93
  %vm95 = vcmp.eq.f32.partialorder %v92, %v94
  %v96 = vsel %vm95, %v16, 128
  %v97 = vand.u32 %v96, 65535
  %v98 = vshra.s32 %v96, 16
  %v99 = vcvt.s32.f32 %v97
  %v100 = vcvt.s32.f32 %v98
  %101 = vmin.xlane.f32.xlu0 %v100
  %v102 = vpop.xlane.xlu0 %101
  %vm103 = vcmp.eq.f32.partialorder %v100, %v102
  %v104 = vsel %vm103, %v99, inf
  %105 = vmin.xlane.f32.xlu0 %v104
  %v106 = vpop.xlane.xlu0 %105
  %v107 = vcvt.f32.s32 %v106
  %v108 = vcvt.f32.s32 %v102
  %v109 = vshll.u32 %v108, 16
  %v110 = vadd.s32 %v109, %v107
  %vm111 = vcmp.eq.s32.totalorder %v16, %v110
  %v112 = vsel %vm111, -inf, %v92
  %113 = vmax.xlane.f32.xlu0 %v112
  %v114 = vpop.xlane.xlu0 %113
  %vm115 = vcmp.eq.f32.partialorder %v112, %v114
  %v116 = vsel %vm115, %v16, 128
  %v117 = vand.u32 %v116, 65535
  %v118 = vshra.s32 %v116, 16
  %v119 = vcvt.s32.f32 %v117
  %v120 = vcvt.s32.f32 %v118
  %121 = vmin.xlane.f32.xlu0 %v120
  %v122 = vpop.xlane.xlu0 %121
  %vm123 = vcmp.eq.f32.partialorder %v120, %v122
  %v124 = vsel %vm123, %v119, inf
  %125 = vmin.xlane.f32.xlu0 %v124
  %v126 = vpop.xlane.xlu0 %125
  %v127 = vcvt.f32.s32 %v126
  %v128 = vcvt.f32.s32 %v122
  %v129 = vshll.u32 %v128, 16
  %v130 = vadd.s32 %v129, %v127
  %vm131 = vcmp.eq.s32.totalorder %v16, %v130
  %v132 = vsel %vm131, -inf, %v112
  %133 = vmax.xlane.f32.xlu0 %v132
  %v134 = vpop.xlane.xlu0 %133
  %vm135 = vcmask 7168
  %136 = vst.msk [vmem:[%s2] sm:$0xff] %vm135, %v89
  %137 = vst.msk [vmem:[%s3] sm:$0xff] %vm135, %v134
  // Predicated region
  $region10: #{tpu_custom_call.1} parent=0 // pred_check
    _
  $region11: #{tpu_custom_call.1} parent=0 // pred_check_branch
    %139 = sbr.rel (0) target = $region13
  $region12: #{tpu_custom_call.1} parent=0 // pred_region
    _
  $region13: #{tpu_custom_call.1} parent=0 // pred_fallthru
    _
  // Predicated region
  $region14: #{tpu_custom_call.1} parent=0 // pred_check
    _
  $region15: #{tpu_custom_call.1} parent=0 // pred_check_branch
    %141 = sbr.rel (0) target = $region17
  $region16: #{tpu_custom_call.1} parent=0 // pred_region
    _
  $region17: #{tpu_custom_call.1} parent=0 // pred_fallthru
    _
  // Predicated region
  $region18: #{tpu_custom_call.1} parent=0 // pred_check
    _
  $region19: #{tpu_custom_call.1} parent=0 // pred_check_branch
    %143 = sbr.rel (0) target = $region21
  $region20: #{tpu_custom_call.1} parent=0 // pred_region
    _
  $region21: #{tpu_custom_call.1} parent=0 // pred_fallthru
    _
  // Predicated region
  $region22: #{tpu_custom_call.1} parent=0 // pred_check
    _
  $region23: #{tpu_custom_call.1} parent=0 // pred_check_branch
    %145 = sbr.rel (0) target = $region25
  $region24: #{tpu_custom_call.1} parent=0 // pred_region
    _
  $region25: #{tpu_custom_call.1} parent=0 // pred_fallthru
    _

</llo_original>
